<compile_context>
chip_gen: v7x
topology: tpu7x:2x2x1
jax: 0.10.0
libtpu: 0.0.40
codegen_flags: <defaults>
</compile_context>

<pallas_src>
import jax
import jax.numpy as jnp
from jax.experimental import pallas as pl
from jax.experimental.pallas import tpu as pltpu


def prediction_mlp_kernel(x_ref, w1_ref, b1_ref, gamma_ref, beta_ref,
                          w2_ref, b2_ref, o_ref, h_ref):
    # Grid axis 0 tiles out_dim. The hidden activation is computed once and kept
    # resident in VMEM scratch across grid steps (axis marked "arbitrary").
    @pl.when(pl.program_id(0) == 0)
    def _():
        # ---- layer1: bf16 x @ bf16 W1 (pre-transposed), f32 accumulation ----
        h = jnp.dot(x_ref[...], w1_ref[...],
                    preferred_element_type=jnp.float32) + b1_ref[...]   # [B, hidden] f32

        # ---- BatchNorm1d (training mode): one-pass batch stats, biased var ----
        n = h.shape[0]
        s = jnp.sum(h, axis=0, keepdims=True)                           # [1, hidden]
        sq = jnp.sum(h * h, axis=0, keepdims=True)                      # [1, hidden]
        mean = s * (1.0 / n)
        var = jnp.maximum(sq * (1.0 / n) - mean * mean, 0.0)            # clamp >= 0
        scale = gamma_ref[...] * jax.lax.rsqrt(var + 1e-5)
        shift = beta_ref[...] - mean * scale

        # ---- folded BN + ReLU, stored bf16 for the second MXU pass ----
        h_ref[...] = jnp.maximum(h * scale + shift, 0.0).astype(h_ref.dtype)

    # ---- layer2 tile: [B, hidden] @ [hidden, TN] + bias, f32 accumulation ----
    o_ref[...] = (jnp.dot(h_ref[...], w2_ref[...],
                          preferred_element_type=jnp.float32)
                  + b2_ref[...]).astype(o_ref.dtype)


def prediction_mlp(x, w1, b1, gamma, beta, w2, b2, *, tn=None):
    """x: [B, in_dim]; PyTorch-layout params: w1 [hidden, in_dim], b1 [hidden],
    gamma/beta [hidden], w2 [out_dim, hidden], b2 [out_dim]."""
    B, in_dim = x.shape
    hidden = w1.shape[0]
    out_dim = w2.shape[0]
    assert w1.shape == (hidden, in_dim) and w2.shape == (out_dim, hidden)

    if tn is None:
        tn = next((c for c in (512, 256, 128) if out_dim % c == 0), out_dim)
    assert out_dim % tn == 0
    grid = (out_dim // tn,)

    # Pre-transpose weights (removes in-kernel XLU transpose) + bf16 MXU operands.
    x_bf = x.astype(jnp.bfloat16)
    w1_t = jnp.asarray(w1, jnp.float32).T.astype(jnp.bfloat16)    # [in_dim, hidden]
    w2_t = jnp.asarray(w2, jnp.float32).T.astype(jnp.bfloat16)    # [hidden, out_dim]
    b1_r = jnp.asarray(b1, jnp.float32).reshape(1, hidden)
    b2_r = jnp.asarray(b2, jnp.float32).reshape(1, out_dim)
    g_r = jnp.asarray(gamma, jnp.float32).reshape(1, hidden)
    be_r = jnp.asarray(beta, jnp.float32).reshape(1, hidden)

    flops = 2 * B * in_dim * hidden + 2 * B * hidden * out_dim
    bytes_accessed = (x_bf.size * 2 + w1_t.size * 2 + w2_t.size * 2
                      + (b1_r.size + b2_r.size + g_r.size + be_r.size) * 4
                      + B * out_dim * 4)

    # VMEM budget: resident x / w1 / scratch + double-buffered layer-2 tiles.
    fixed = B * in_dim * 2 + in_dim * hidden * 2 + 4 * hidden * 4 + B * hidden * 2
    per_tile = hidden * tn * 2 + tn * 4 + B * tn * 4
    vmem_limit = int(min(max(2 * (fixed + 2 * per_tile) + (2 << 20), 16 << 20),
                         64 << 20))

    return pl.pallas_call(
        prediction_mlp_kernel,
        out_shape=jax.ShapeDtypeStruct((B, out_dim), jnp.float32),
        grid_spec=pltpu.PrefetchScalarGridSpec(
            num_scalar_prefetch=0,
            grid=grid,
            in_specs=[
                pl.BlockSpec((B, in_dim), lambda j: (0, 0)),        # x (resident)
                pl.BlockSpec((in_dim, hidden), lambda j: (0, 0)),   # w1^T (resident)
                pl.BlockSpec((1, hidden), lambda j: (0, 0)),        # b1
                pl.BlockSpec((1, hidden), lambda j: (0, 0)),        # gamma
                pl.BlockSpec((1, hidden), lambda j: (0, 0)),        # beta
                pl.BlockSpec((hidden, tn), lambda j: (0, j)),       # w2^T tile
                pl.BlockSpec((1, tn), lambda j: (0, j)),            # b2 tile
            ],
            out_specs=pl.BlockSpec((B, tn), lambda j: (0, j)),
            scratch_shapes=[pltpu.VMEM((B, hidden), jnp.bfloat16)],
        ),
        compiler_params=pltpu.CompilerParams(
            dimension_semantics=("arbitrary",),   # scratch carried across steps
            vmem_limit_bytes=vmem_limit,
        ),
        cost_estimate=pl.CostEstimate(
            flops=flops, transcendentals=hidden, bytes_accessed=bytes_accessed),
    )(x_bf, w1_t, b1_r, g_r, be_r, w2_t, b2_r)


def _ref_mixed(x, w1, b1, gamma, beta, w2, b2):
    """Reference with the same bf16-matmul / f32-accumulate recipe as the kernel."""
    h = jnp.dot(x.astype(jnp.bfloat16), w1.T.astype(jnp.bfloat16),
                preferred_element_type=jnp.float32) + b1.reshape(1, -1)
    mean = jnp.mean(h, axis=0, keepdims=True)
    var = jnp.maximum(jnp.mean(h * h, axis=0, keepdims=True) - mean * mean, 0.0)
    scale = gamma.reshape(1, -1) * jax.lax.rsqrt(var + 1e-5)
    shift = beta.reshape(1, -1) - mean * scale
    h = jnp.maximum(h * scale + shift, 0.0).astype(jnp.bfloat16)
    return jnp.dot(h, w2.T.astype(jnp.bfloat16),
                   preferred_element_type=jnp.float32) + b2.reshape(1, -1)


def _ref_f32(x, w1, b1, gamma, beta, w2, b2):
    """Full-precision reference matching the PyTorch module (train-mode BN)."""
    h = x @ w1.T + b1.reshape(1, -1)
    mean = jnp.mean(h, axis=0, keepdims=True)
    var = jnp.mean((h - mean) ** 2, axis=0, keepdims=True)
    h = (h - mean) * jax.lax.rsqrt(var + 1e-5) * gamma.reshape(1, -1) + beta.reshape(1, -1)
    h = jnp.maximum(h, 0.0)
    return h @ w2.T + b2.reshape(1, -1)


if __name__ == "__main__":
    # Small but lane-dense shapes (feature dims multiples of 128), same bottleneck
    # structure as the real 2048 -> 512 -> 2048 module.
    B, in_dim, hidden_dim, out_dim = 16, 256, 128, 256

    key = jax.random.PRNGKey(0)
    kx, k1w, k1b, k2w, k2b = jax.random.split(key, 5)

    x = jax.random.normal(kx, (B, in_dim), dtype=jnp.float32)

    # PyTorch nn.Linear default init: U(-1/sqrt(fan_in), 1/sqrt(fan_in))
    lim1 = 1.0 / (in_dim ** 0.5)
    w1 = jax.random.uniform(k1w, (hidden_dim, in_dim), jnp.float32, -lim1, lim1)
    b1 = jax.random.uniform(k1b, (hidden_dim,), jnp.float32, -lim1, lim1)

    # BatchNorm1d default affine init: gamma=1, beta=0
    gamma = jnp.ones((hidden_dim,), jnp.float32)
    beta = jnp.zeros((hidden_dim,), jnp.float32)

    lim2 = 1.0 / (hidden_dim ** 0.5)
    w2 = jax.random.uniform(k2w, (out_dim, hidden_dim), jnp.float32, -lim2, lim2)
    b2 = jax.random.uniform(k2b, (out_dim,), jnp.float32, -lim2, lim2)

    # tn=128 -> grid=(2,), exercising the tiled layer-2 / persistent-scratch path.
    out = prediction_mlp(x, w1, b1, gamma, beta, w2, b2, tn=128)
    out = jax.block_until_ready(out)

    ref_m = _ref_mixed(x, w1, b1, gamma, beta, w2, b2)
    ref_f = _ref_f32(x, w1, b1, gamma, beta, w2, b2)

    assert out.shape == (B, out_dim)
    # Tight check against the precision-matched reference.
    assert jnp.allclose(out, ref_m, atol=1e-2, rtol=1e-2), \
        float(jnp.max(jnp.abs(out - ref_m)))
    # Loose check against the full-f32 PyTorch-equivalent reference.
    assert jnp.allclose(out, ref_f, atol=1e-1, rtol=1e-1), \
        float(jnp.max(jnp.abs(out - ref_f)))

    print("KERNEL_OK")
</pallas_src>

<mosaic_0001>
module attributes {stable_mosaic.version = 11 : i64} {
  func.func @prediction_mlp_kernel(%arg0: i32, %arg1: memref<16x256xbf16, #tpu.memory_space<vmem>>, %arg2: memref<256x128xbf16, #tpu.memory_space<vmem>>, %arg3: memref<1x128xf32, #tpu.memory_space<vmem>>, %arg4: memref<1x128xf32, #tpu.memory_space<vmem>>, %arg5: memref<1x128xf32, #tpu.memory_space<vmem>>, %arg6: memref<128x128xbf16, #tpu.memory_space<vmem>>, %arg7: memref<1x128xf32, #tpu.memory_space<vmem>>, %arg8: memref<16x128xf32, #tpu.memory_space<vmem>>, %arg9: memref<16x128xbf16, #tpu.memory_space<vmem>>) attributes {dimension_semantics = [#tpu.dimension_semantics<arbitrary>], iteration_bounds = array<i64: 2>, scalar_prefetch = 0 : i64, scratch_operands = 1 : i64, tpu.core_type = #tpu.core_type<tc>, window_params = [{pipeline_mode = #tpu.pipeline_mode<synchronous>, transform_indices = @transform_0, window_bounds = array<i64: 16, 256>}, {pipeline_mode = #tpu.pipeline_mode<synchronous>, transform_indices = @transform_1, window_bounds = array<i64: 256, 128>}, {pipeline_mode = #tpu.pipeline_mode<synchronous>, transform_indices = @transform_2, window_bounds = array<i64: 1, 128>}, {pipeline_mode = #tpu.pipeline_mode<synchronous>, transform_indices = @transform_3, window_bounds = array<i64: 1, 128>}, {pipeline_mode = #tpu.pipeline_mode<synchronous>, transform_indices = @transform_4, window_bounds = array<i64: 1, 128>}, {transform_indices = @transform_5, window_bounds = array<i64: 128, 128>}, {transform_indices = @transform_6, window_bounds = array<i64: 1, 128>}, {transform_indices = @transform_7, window_bounds = array<i64: 16, 128>}]} {
    %c0_i32 = arith.constant 0 : i32
    %0 = arith.cmpi eq, %arg0, %c0_i32 : i32
    %1 = arith.extui %0 : i1 to i32
    %c0_i32_0 = arith.constant 0 : i32
    %2 = arith.cmpi ne, %1, %c0_i32_0 : i32
    scf.if %2 {
      %c0_8 = arith.constant 0 : index
      %c0_9 = arith.constant 0 : index
      %10 = vector.load %arg1[%c0_8, %c0_9] : memref<16x256xbf16, #tpu.memory_space<vmem>>, vector<16x256xbf16>
      %c0_10 = arith.constant 0 : index
      %c0_11 = arith.constant 0 : index
      %11 = vector.load %arg2[%c0_10, %c0_11] : memref<256x128xbf16, #tpu.memory_space<vmem>>, vector<256x128xbf16>
      %cst_12 = arith.constant dense<0.000000e+00> : vector<16x128xf32>
      %12 = tpu.matmul %10, %11, %cst_12 {dimension_numbers = #tpu.dot_dimension_numbers<[1], [0], [0], [1], [0, 0, 1, 1], [], []>} : vector<16x256xbf16>, vector<256x128xbf16>, vector<16x128xf32> -> vector<16x128xf32>
      %c0_13 = arith.constant 0 : index
      %c0_14 = arith.constant 0 : index
      %13 = vector.load %arg3[%c0_13, %c0_14] : memref<1x128xf32, #tpu.memory_space<vmem>>, vector<1x128xf32>
      %14 = vector.broadcast %13 : vector<1x128xf32> to vector<16x128xf32>
      %15 = arith.addf %12, %14 : vector<16x128xf32>
      %cst_15 = arith.constant dense<0.000000e+00> : vector<128xf32>
      %16 = vector.multi_reduction <add>, %15, %cst_15 [0] : vector<16x128xf32> to vector<128xf32>
      %17 = vector.shape_cast %16 : vector<128xf32> to vector<1x128xf32>
      %18 = arith.mulf %15, %15 : vector<16x128xf32>
      %cst_16 = arith.constant dense<0.000000e+00> : vector<128xf32>
      %19 = vector.multi_reduction <add>, %18, %cst_16 [0] : vector<16x128xf32> to vector<128xf32>
      %20 = vector.shape_cast %19 : vector<128xf32> to vector<1x128xf32>
      %cst_17 = arith.constant 6.250000e-02 : f32
      %21 = vector.broadcast %cst_17 : f32 to vector<1x128xf32>
      %22 = arith.mulf %17, %21 : vector<1x128xf32>
      %cst_18 = arith.constant 6.250000e-02 : f32
      %23 = vector.broadcast %cst_18 : f32 to vector<1x128xf32>
      %24 = arith.mulf %20, %23 : vector<1x128xf32>
      %25 = arith.mulf %22, %22 : vector<1x128xf32>
      %26 = arith.subf %24, %25 : vector<1x128xf32>
      %cst_19 = arith.constant 0.000000e+00 : f32
      %27 = vector.broadcast %cst_19 : f32 to vector<1x128xf32>
      %28 = arith.maximumf %26, %27 : vector<1x128xf32>
      %c0_20 = arith.constant 0 : index
      %c0_21 = arith.constant 0 : index
      %29 = vector.load %arg4[%c0_20, %c0_21] : memref<1x128xf32, #tpu.memory_space<vmem>>, vector<1x128xf32>
      %cst_22 = arith.constant 9.99999974E-6 : f32
      %30 = vector.broadcast %cst_22 : f32 to vector<1x128xf32>
      %31 = arith.addf %28, %30 : vector<1x128xf32>
      %32 = math.rsqrt %31 : vector<1x128xf32>
      %33 = arith.mulf %29, %32 : vector<1x128xf32>
      %c0_23 = arith.constant 0 : index
      %c0_24 = arith.constant 0 : index
      %34 = vector.load %arg5[%c0_23, %c0_24] : memref<1x128xf32, #tpu.memory_space<vmem>>, vector<1x128xf32>
      %35 = arith.mulf %22, %33 : vector<1x128xf32>
      %36 = arith.subf %34, %35 : vector<1x128xf32>
      %37 = vector.broadcast %33 : vector<1x128xf32> to vector<16x128xf32>
      %38 = arith.mulf %15, %37 : vector<16x128xf32>
      %39 = vector.broadcast %36 : vector<1x128xf32> to vector<16x128xf32>
      %40 = arith.addf %38, %39 : vector<16x128xf32>
      %cst_25 = arith.constant 0.000000e+00 : f32
      %41 = vector.broadcast %cst_25 : f32 to vector<16x128xf32>
      %42 = arith.maximumf %40, %41 : vector<16x128xf32>
      %43 = arith.truncf %42 : vector<16x128xf32> to vector<16x128xbf16>
      %c0_26 = arith.constant 0 : index
      %c0_27 = arith.constant 0 : index
      %44 = vector.load %arg9[%c0_26, %c0_27] : memref<16x128xbf16, #tpu.memory_space<vmem>>, vector<16x128xbf16>
      tpu.vector_store %arg9[%c0_26, %c0_27], %43 {strides = array<i32>} : memref<16x128xbf16, #tpu.memory_space<vmem>>, vector<16x128xbf16>,
    } else {
    }
    %c0 = arith.constant 0 : index
    %c0_1 = arith.constant 0 : index
    %3 = vector.load %arg9[%c0, %c0_1] : memref<16x128xbf16, #tpu.memory_space<vmem>>, vector<16x128xbf16>
    %c0_2 = arith.constant 0 : index
    %c0_3 = arith.constant 0 : index
    %4 = vector.load %arg6[%c0_2, %c0_3] : memref<128x128xbf16, #tpu.memory_space<vmem>>, vector<128x128xbf16>
    %cst = arith.constant dense<0.000000e+00> : vector<16x128xf32>
    %5 = tpu.matmul %3, %4, %cst {dimension_numbers = #tpu.dot_dimension_numbers<[1], [0], [0], [1], [0, 0, 1, 1], [], []>} : vector<16x128xbf16>, vector<128x128xbf16>, vector<16x128xf32> -> vector<16x128xf32>
    %c0_4 = arith.constant 0 : index
    %c0_5 = arith.constant 0 : index
    %6 = vector.load %arg7[%c0_4, %c0_5] : memref<1x128xf32, #tpu.memory_space<vmem>>, vector<1x128xf32>
    %7 = vector.broadcast %6 : vector<1x128xf32> to vector<16x128xf32>
    %8 = arith.addf %5, %7 : vector<16x128xf32>
    %c0_6 = arith.constant 0 : index
    %c0_7 = arith.constant 0 : index
    %9 = vector.load %arg8[%c0_6, %c0_7] : memref<16x128xf32, #tpu.memory_space<vmem>>, vector<16x128xf32>
    tpu.vector_store %arg8[%c0_6, %c0_7], %8 {strides = array<i32>} : memref<16x128xf32, #tpu.memory_space<vmem>>, vector<16x128xf32>,
    return
  }
  func.func @transform_0(%arg0: i32) -> (i32, i32) {
    %c0_i32 = arith.constant 0 : i32
    %c0_i32_0 = arith.constant 0 : i32
    %c0_i32_1 = arith.constant 0 : i32
    return %c0_i32, %c0_i32_0 : i32, i32
  }
  func.func @transform_1(%arg0: i32) -> (i32, i32) {
    %c0_i32 = arith.constant 0 : i32
    %c0_i32_0 = arith.constant 0 : i32
    %c0_i32_1 = arith.constant 0 : i32
    return %c0_i32, %c0_i32_0 : i32, i32
  }
  func.func @transform_2(%arg0: i32) -> (i32, i32) {
    %c0_i32 = arith.constant 0 : i32
    %c0_i32_0 = arith.constant 0 : i32
    %c0_i32_1 = arith.constant 0 : i32
    return %c0_i32, %c0_i32_0 : i32, i32
  }
  func.func @transform_3(%arg0: i32) -> (i32, i32) {
    %c0_i32 = arith.constant 0 : i32
    %c0_i32_0 = arith.constant 0 : i32
    %c0_i32_1 = arith.constant 0 : i32
    return %c0_i32, %c0_i32_0 : i32, i32
  }
  func.func @transform_4(%arg0: i32) -> (i32, i32) {
    %c0_i32 = arith.constant 0 : i32
    %c0_i32_0 = arith.constant 0 : i32
    %c0_i32_1 = arith.constant 0 : i32
    return %c0_i32, %c0_i32_0 : i32, i32
  }
  func.func @transform_5(%arg0: i32) -> (i32, i32) {
    %c0_i32 = arith.constant 0 : i32
    %c0_i32_0 = arith.constant 0 : i32
    return %c0_i32, %arg0 : i32, i32
  }
  func.func @transform_6(%arg0: i32) -> (i32, i32) {
    %c0_i32 = arith.constant 0 : i32
    %c0_i32_0 = arith.constant 0 : i32
    return %c0_i32, %arg0 : i32, i32
  }
  func.func @transform_7(%arg0: i32) -> (i32, i32) {
    %c0_i32 = arith.constant 0 : i32
    %c0_i32_0 = arith.constant 0 : i32
    return %c0_i32, %arg0 : i32, i32
  }
}

</mosaic_0001>

<llo_original>
// kernel: tpu_custom_call.1
$region0: #{tpu_custom_call.1}
  #allocation0 [shape = 'u32[]', space=smem, size = 0x4, offset = 0x4, fixed_abs, tag = 'smem constant byte address 0x4 - core index']
  #allocation1 [shape = 'u32[144,128]{1,0:T(1,128)}', space=vmem, size = 0x12000, scoped, tag = 'internal scratch']
  #allocation2 [shape = 'bf16[16,128]{1,0:T(16,128)(2,1)}', space=vmem, size = 0x1000, scoped, tag = 'scratch operand']
  %s0 = inlined_call_operand.hbm [shape: bf16[16,256], index: 0, kind: input, shape index: {}]
  %s1 = inlined_call_operand.hbm [shape: bf16[256,128], index: 1, kind: input, shape index: {}]
  %s2 = inlined_call_operand.vmem [shape: f32[1,128], index: 2, kind: input, shape index: {}]
  %s3 = inlined_call_operand.vmem [shape: f32[1,128], index: 3, kind: input, shape index: {}]
  %s4 = inlined_call_operand.vmem [shape: f32[1,128], index: 4, kind: input, shape index: {}]
  %s5 = inlined_call_operand.hbm [shape: bf16[128,256], index: 5, kind: input, shape index: {}]
  %s6 = inlined_call_operand.vmem [shape: f32[1,256], index: 6, kind: input, shape index: {}]
  %s7 = inlined_call_operand.hbm [shape: f32[16,256], index: 7, kind: output, shape index: {}]
  %s8 = sld [smem:[#allocation0]]
  $region77: #{tpu_custom_call.1} parent=0
    _
  %s10 = ssub.s32 1, %s8
  %s11 = scalar_select 0, %s10, %s8
  $region1: #{tpu_custom_call.1} parent=0
    #allocation3 [shape = 'u8[8192]{0}', space=vmem, size = 0x2000, scoped, tag = 'input window, operand 0, single buffered']
    #allocation4 [shape = 's32[2]{0}', space=sflag, size = 0x8, scoped, tag = 'scoped memory for tpu_custom_call.1']
    #allocation5 [shape = 's32[2]{0}', space=sflag, size = 0x8, scoped, tag = 'scoped memory for tpu_custom_call.1']
    #allocation6 [shape = 'u8[65536]{0}', space=vmem, size = 0x10000, scoped, tag = 'input window, operand 1, single buffered']
    #allocation7 [shape = 's32[1]{0}', space=sflag, size = 0x4, scoped, tag = 'scoped memory for tpu_custom_call.1']
    #allocation8 [shape = 'u8[65536]{0}', space=vmem, size = 0x10000, scoped, tag = 'input window, operand 5']
    #allocation9 [shape = 'u8[16384]{0}', space=vmem, size = 0x4000, scoped, tag = 'output window, operand 0']
    %12 = vsyncpa [#allocation4], 0
    %13 = vsyncpa [#allocation7], 0
    %14 = vsyncpa [#allocation5], 0
    %s15 = scalar_lea.sflag [#allocation5], 1
    %16 = vsyncpa %s15, 0
    loop: start=0, step=1, limit=4
    $region2: #{tpu_custom_call.1} parent=1 // loop_pre_header
      _
    $region3: #{tpu_custom_call.1} parent=1 // loop_header
      %s18 = sphi 0, %s22
      %p19 = scmp.ge.s32.totalorder %s18, 4
      %s26 = sphi 0, %s26
      %s28 = sphi 0, %s26
      %s29 = sphi 0, %s28
      %s43 = sphi 0, %s29
      %s47 = sphi 0, %s47
      %s49 = sphi 0, %s47
      %s50 = sphi 0, %s49
      %s64 = sphi 0, %s50
      %s68 = sphi 0, %s68
      %s70 = sphi 0, %s68
      %s71 = sphi 0, %s70
      %s85 = sphi 0, %s71
      %s89 = sphi 0, %s89
      %s91 = sphi 0, %s89
      %s92 = sphi 0, %s91
      %s106 = sphi 0, %s92
      %s110 = sphi 0, %s110
      %s112 = sphi 0, %s110
      %s113 = sphi 0, %s112
      %s127 = sphi 0, %s113
      %s133 = sphi 0, %s135
      %s136 = sphi 0, %s133
      %s137 = sphi 0, %s136
      %s153 = sphi 0, %s137
      %s159 = sphi 0, %s161
      %s162 = sphi 0, %s159
      %s163 = sphi 0, %s162
      %s179 = sphi 0, %s163
      %s185 = sphi 0, %s187
      %s188 = sphi 0, %s185
      %s189 = sphi 0, %s188
      %s205 = sphi 0, %s189
    $region4: #{tpu_custom_call.1} parent=1 // loop_header_branch
      %21 = sbr.rel (%p19) target = $region8
    $region5: #{tpu_custom_call.1} parent=1 // loop_body
      %s23 = ssub.s32 %s18, 1
      %s24 = ssub.s32 %s18, 2
      %s25 = sadd.s32 %s18, 1
      %s27 = sadd.s32 %s26, 1
      %p30 = scmp.eq.s32.totalorder %s18, 1
      %p31 = scmp.ne.s32.totalorder %s26, %s28
      %p32 = scmp.eq.s32.totalorder %s18, 0
      %p33 = por %p31, %p32
      %p34 = scmp.ne.s32.totalorder %s26, %s28
      %p35 = scmp.eq.s32.totalorder %s23, 1
      %p36 = por %p34, %p35
      %p37 = scmp.ne.s32.totalorder %s28, %s29
      %p38 = scmp.eq.s32.totalorder %s23, 0
      %p39 = por %p37, %p38
      %p40 = scmp.ne.s32.totalorder %s28, %s29
      %p41 = scmp.eq.s32.totalorder %s24, 1
      %p42 = por %p40, %p41
      %p44 = scmp.ne.s32.totalorder %s29, %s43
      %p45 = scmp.eq.s32.totalorder %s24, 0
      %p46 = por %p44, %p45
      %s48 = sadd.s32 %s47, 1
      %p51 = scmp.eq.s32.totalorder %s18, 1
      %p52 = scmp.ne.s32.totalorder %s47, %s49
      %p53 = scmp.eq.s32.totalorder %s18, 0
      %p54 = por %p52, %p53
      %p55 = scmp.ne.s32.totalorder %s47, %s49
      %p56 = scmp.eq.s32.totalorder %s23, 1
      %p57 = por %p55, %p56
      %p58 = scmp.ne.s32.totalorder %s49, %s50
      %p59 = scmp.eq.s32.totalorder %s23, 0
      %p60 = por %p58, %p59
      %p61 = scmp.ne.s32.totalorder %s49, %s50
      %p62 = scmp.eq.s32.totalorder %s24, 1
      %p63 = por %p61, %p62
      %p65 = scmp.ne.s32.totalorder %s50, %s64
      %p66 = scmp.eq.s32.totalorder %s24, 0
      %p67 = por %p65, %p66
      %s69 = sadd.s32 %s68, 1
      %p72 = scmp.eq.s32.totalorder %s18, 1
      %p73 = scmp.ne.s32.totalorder %s68, %s70
      %p74 = scmp.eq.s32.totalorder %s18, 0
      %p75 = por %p73, %p74
      %p76 = scmp.ne.s32.totalorder %s68, %s70
      %p77 = scmp.eq.s32.totalorder %s23, 1
      %p78 = por %p76, %p77
      %p79 = scmp.ne.s32.totalorder %s70, %s71
      %p80 = scmp.eq.s32.totalorder %s23, 0
      %p81 = por %p79, %p80
      %p82 = scmp.ne.s32.totalorder %s70, %s71
      %p83 = scmp.eq.s32.totalorder %s24, 1
      %p84 = por %p82, %p83
      %p86 = scmp.ne.s32.totalorder %s71, %s85
      %p87 = scmp.eq.s32.totalorder %s24, 0
      %p88 = por %p86, %p87
      %s90 = sadd.s32 %s89, 1
      %p93 = scmp.eq.s32.totalorder %s18, 1
      %p94 = scmp.ne.s32.totalorder %s89, %s91
      %p95 = scmp.eq.s32.totalorder %s18, 0
      %p96 = por %p94, %p95
      %p97 = scmp.ne.s32.totalorder %s89, %s91
      %p98 = scmp.eq.s32.totalorder %s23, 1
      %p99 = por %p97, %p98
      %p100 = scmp.ne.s32.totalorder %s91, %s92
      %p101 = scmp.eq.s32.totalorder %s23, 0
      %p102 = por %p100, %p101
      %p103 = scmp.ne.s32.totalorder %s91, %s92
      %p104 = scmp.eq.s32.totalorder %s24, 1
      %p105 = por %p103, %p104
      %p107 = scmp.ne.s32.totalorder %s92, %s106
      %p108 = scmp.eq.s32.totalorder %s24, 0
      %p109 = por %p107, %p108
      %s111 = sadd.s32 %s110, 1
      %p114 = scmp.eq.s32.totalorder %s18, 1
      %p115 = scmp.ne.s32.totalorder %s110, %s112
      %p116 = scmp.eq.s32.totalorder %s18, 0
      %p117 = por %p115, %p116
      %p118 = scmp.ne.s32.totalorder %s110, %s112
      %p119 = scmp.eq.s32.totalorder %s23, 1
      %p120 = por %p118, %p119
      %p121 = scmp.ne.s32.totalorder %s112, %s113
      %p122 = scmp.eq.s32.totalorder %s23, 0
      %p123 = por %p121, %p122
      %p124 = scmp.ne.s32.totalorder %s112, %s113
      %p125 = scmp.eq.s32.totalorder %s24, 1
      %p126 = por %p124, %p125
      %p128 = scmp.ne.s32.totalorder %s113, %s127
      %p129 = scmp.eq.s32.totalorder %s24, 0
      %p130 = por %p128, %p129
      %s131 = ssub.s32 %s18, %s25
      %p132 = scmp.eq.s32.totalorder %s131, 0
      %s134 = sadd.s32 %s133, 1
      %s135 = scalar_select %p132, %s133, %s134
      %p138 = pneg %p132
      %p139 = scmp.eq.s32.totalorder %s18, 1
      %p140 = por %p138, %p139
      %p141 = scmp.ne.s32.totalorder %s133, %s136
      %p142 = scmp.eq.s32.totalorder %s18, 0
      %p143 = por %p141, %p142
      %p144 = scmp.ne.s32.totalorder %s133, %s136
      %p145 = scmp.eq.s32.totalorder %s23, 1
      %p146 = por %p144, %p145
      %p147 = scmp.ne.s32.totalorder %s136, %s137
      %p148 = scmp.eq.s32.totalorder %s23, 0
      %p149 = por %p147, %p148
      %p150 = scmp.ne.s32.totalorder %s136, %s137
      %p151 = scmp.eq.s32.totalorder %s24, 1
      %p152 = por %p150, %p151
      %p154 = scmp.ne.s32.totalorder %s137, %s153
      %p155 = scmp.eq.s32.totalorder %s24, 0
      %p156 = por %p154, %p155
      %s157 = ssub.s32 %s18, %s25
      %p158 = scmp.eq.s32.totalorder %s157, 0
      %s160 = sadd.s32 %s159, 1
      %s161 = scalar_select %p158, %s159, %s160
      %p164 = pneg %p158
      %p165 = scmp.eq.s32.totalorder %s18, 1
      %p166 = por %p164, %p165
      %p167 = scmp.ne.s32.totalorder %s159, %s162
      %p168 = scmp.eq.s32.totalorder %s18, 0
      %p169 = por %p167, %p168
      %p170 = scmp.ne.s32.totalorder %s159, %s162
      %p171 = scmp.eq.s32.totalorder %s23, 1
      %p172 = por %p170, %p171
      %p173 = scmp.ne.s32.totalorder %s162, %s163
      %p174 = scmp.eq.s32.totalorder %s23, 0
      %p175 = por %p173, %p174
      %p176 = scmp.ne.s32.totalorder %s162, %s163
      %p177 = scmp.eq.s32.totalorder %s24, 1
      %p178 = por %p176, %p177
      %p180 = scmp.ne.s32.totalorder %s163, %s179
      %p181 = scmp.eq.s32.totalorder %s24, 0
      %p182 = por %p180, %p181
      %s183 = ssub.s32 %s18, %s25
      %p184 = scmp.eq.s32.totalorder %s183, 0
      %s186 = sadd.s32 %s185, 1
      %s187 = scalar_select %p184, %s185, %s186
      %p190 = pneg %p184
      %p191 = scmp.eq.s32.totalorder %s18, 1
      %p192 = por %p190, %p191
      %p193 = scmp.ne.s32.totalorder %s185, %s188
      %p194 = scmp.eq.s32.totalorder %s18, 0
      %p195 = por %p193, %p194
      %p196 = scmp.ne.s32.totalorder %s185, %s188
      %p197 = scmp.eq.s32.totalorder %s23, 1
      %p198 = por %p196, %p197
      %p199 = scmp.ne.s32.totalorder %s188, %s189
      %p200 = scmp.eq.s32.totalorder %s23, 0
      %p201 = por %p199, %p200
      %p202 = scmp.ne.s32.totalorder %s188, %s189
      %p203 = scmp.eq.s32.totalorder %s24, 1
      %p204 = por %p202, %p203
      %p206 = scmp.ne.s32.totalorder %s189, %s205
      %p207 = scmp.eq.s32.totalorder %s24, 0
      %p208 = por %p206, %p207
      %p209 = scmp.le.s32.totalorder 1, %s18
      %p210 = scmp.lt.s32.totalorder %s18, 3
      %p211 = pnand %p209, %p210
      %p212 = pneg %p211
      // Predicated region
      $region9: #{tpu_custom_call.1} parent=5 // pred_check
        _
      $region10: #{tpu_custom_call.1} parent=5 // pred_check_branch
        %214 = sbr.rel (%p211) target = $region12
      $region11: #{tpu_custom_call.1} parent=5 // pred_region
        %s215 = ssub.s32 %s18, 1
        // Predicated region
        $region13: #{tpu_custom_call.1} parent=11 // pred_check
          %p216 = pneg %p39
        $region14: #{tpu_custom_call.1} parent=11 // pred_check_branch
          %218 = sbr.rel (%p216) target = $region16
        $region15: #{tpu_custom_call.1} parent=11 // pred_region
          %s220 = ssub.s32 256, 256
          %221 = vsyncadd [#allocation4], %s220
          %s222 = sshll.u32 [#allocation3], 4
          %s223 = int_to_ptr.vmem [resolvable:$true] %s222
          %228 = dma.hbm_to_vmem [thread:$0]  %s0, 256, %s223, [#allocation4], 128, 128, 8
        $region16: #{tpu_custom_call.1} parent=11 // pred_fallthru
          _
        // Predicated region
        $region17: #{tpu_custom_call.1} parent=11 // pred_check
          %p229 = pneg %p60
        $region18: #{tpu_custom_call.1} parent=11 // pred_check_branch
          %231 = sbr.rel (%p229) target = $region20
        $region19: #{tpu_custom_call.1} parent=11 // pred_region
          %s233 = ssub.s32 2048, 2048
          %234 = vsyncadd [#allocation7], %s233
          %s235 = sshll.u32 [#allocation6], 4
          %s236 = int_to_ptr.vmem [resolvable:$true] %s235
          %241 = dma.hbm_to_vmem [thread:$0]  %s1, 2048, %s236, [#allocation7], 64, 64, 4
        $region20: #{tpu_custom_call.1} parent=11 // pred_fallthru
          _
        // Predicated region
        $region21: #{tpu_custom_call.1} parent=11 // pred_check
          %p242 = pneg %p81
        $region22: #{tpu_custom_call.1} parent=11 // pred_check_branch
          %244 = sbr.rel (%p242) target = $region24
        $region23: #{tpu_custom_call.1} parent=11 // pred_region
          _
        $region24: #{tpu_custom_call.1} parent=11 // pred_fallthru
          _
        // Predicated region
        $region25: #{tpu_custom_call.1} parent=11 // pred_check
          %p245 = pneg %p102
        $region26: #{tpu_custom_call.1} parent=11 // pred_check_branch
          %247 = sbr.rel (%p245) target = $region28
        $region27: #{tpu_custom_call.1} parent=11 // pred_region
          _
        $region28: #{tpu_custom_call.1} parent=11 // pred_fallthru
          _
        // Predicated region
        $region29: #{tpu_custom_call.1} parent=11 // pred_check
          %p248 = pneg %p123
        $region30: #{tpu_custom_call.1} parent=11 // pred_check_branch
          %250 = sbr.rel (%p248) target = $region32
        $region31: #{tpu_custom_call.1} parent=11 // pred_region
          _
        $region32: #{tpu_custom_call.1} parent=11 // pred_fallthru
          _
      $region12: #{tpu_custom_call.1} parent=5 // pred_fallthru
        _
      %p251 = scmp.lt.s32.totalorder %s18, 2
      // Predicated region
      $region33: #{tpu_custom_call.1} parent=5 // pred_check
        %p252 = pneg %p251
      $region34: #{tpu_custom_call.1} parent=5 // pred_check_branch
        %254 = sbr.rel (%p252) target = $region36
      $region35: #{tpu_custom_call.1} parent=5 // pred_region
        // Predicated region
        $region37: #{tpu_custom_call.1} parent=35 // pred_check
          %p255 = pneg %p143
        $region38: #{tpu_custom_call.1} parent=35 // pred_check_branch
          %257 = sbr.rel (%p255) target = $region40
        $region39: #{tpu_custom_call.1} parent=35 // pred_region
          %s258 = sand.u32 %s18, 1
          %s259 = scalar_lea.sflag [#allocation4], %s258
          %s260 = sand.u32 %s133, 1
          %s261 = smul.addr %s260, 64
          %s262 = scalar_lea.vmem [#allocation8], %s261
          %s264 = ssub.s32 1024, 1024
          %265 = vsyncadd %s259, %s264
          %s266 = smul.addr %s18, 64
          %s267 = scalar_lea.hbm %s5, %s266
          %s268 = sshll.u32 %s262, 4
          %s269 = int_to_ptr.vmem [resolvable:$true] %s268
          %274 = dma.hbm_to_vmem [thread:$0]  %s267, 1024, %s269, %s259, 128, 64, 4
        $region40: #{tpu_custom_call.1} parent=35 // pred_fallthru
          _
        // Predicated region
        $region41: #{tpu_custom_call.1} parent=35 // pred_check
          %p275 = pneg %p169
        $region42: #{tpu_custom_call.1} parent=35 // pred_check_branch
          %277 = sbr.rel (%p275) target = $region44
        $region43: #{tpu_custom_call.1} parent=35 // pred_region
          %p278 = scmp.lt.s32.totalorder %s18, 1
          %s279 = scalar_select %p278, %s18, 1
          %s280 = scalar_lea.vmem %s6, %s279
        $region44: #{tpu_custom_call.1} parent=35 // pred_fallthru
          _
      $region36: #{tpu_custom_call.1} parent=5 // pred_fallthru
        _
      %p281 = scmp.le.s32.totalorder 1, %s18
      %p282 = scmp.lt.s32.totalorder %s18, 3
      %p283 = pnand %p281, %p282
      %p284 = pneg %p283
      // Predicated region
      $region45: #{tpu_custom_call.1} parent=5 // pred_check
        _
      $region46: #{tpu_custom_call.1} parent=5 // pred_check_branch
        %286 = sbr.rel (%p283) target = $region48
      $region47: #{tpu_custom_call.1} parent=5 // pred_region
        %s287 = ssub.s32 %s18, 1
        // Predicated region
        $region49: #{tpu_custom_call.1} parent=47 // pred_check
          %p288 = pneg %p39
        $region50: #{tpu_custom_call.1} parent=47 // pred_check_branch
          %290 = sbr.rel (%p288) target = $region52
        $region51: #{tpu_custom_call.1} parent=47 // pred_region
          %291 = dma.done [#allocation4], 256
        $region52: #{tpu_custom_call.1} parent=47 // pred_fallthru
          _
        // Predicated region
        $region53: #{tpu_custom_call.1} parent=47 // pred_check
          %p292 = pneg %p60
        $region54: #{tpu_custom_call.1} parent=47 // pred_check_branch
          %294 = sbr.rel (%p292) target = $region56
        $region55: #{tpu_custom_call.1} parent=47 // pred_region
          %295 = dma.done [#allocation7], 2048
        $region56: #{tpu_custom_call.1} parent=47 // pred_fallthru
          _
        %s296 = sand.u32 %s23, 1
        %s297 = scalar_lea.sflag [#allocation4], %s296
        %s298 = sand.u32 %s136, 1
        %s299 = smul.addr %s298, 64
        %s300 = scalar_lea.vmem [#allocation8], %s299
        // Predicated region
        $region57: #{tpu_custom_call.1} parent=47 // pred_check
          %p301 = pneg %p149
        $region58: #{tpu_custom_call.1} parent=47 // pred_check_branch
          %303 = sbr.rel (%p301) target = $region60
        $region59: #{tpu_custom_call.1} parent=47 // pred_region
          %304 = dma.done %s297, 1024
        $region60: #{tpu_custom_call.1} parent=47 // pred_fallthru
          _
        %p305 = pneg %p39
        %p306 = pneg %p36
        %p307 = pneg %p60
        %p308 = pneg %p57
        %p309 = pneg %p81
        %p310 = pneg %p78
        %p311 = pneg %p102
        %p312 = pneg %p99
        %p313 = pneg %p123
        %p314 = pneg %p120
        %s315 = sand.u32 %s23, 1
        %s316 = scalar_lea.sflag [#allocation4], %s315
        %s317 = sand.u32 %s136, 1
        %s318 = smul.addr %s317, 64
        %s319 = scalar_lea.vmem [#allocation8], %s318
        %p320 = pneg %p149
        %p321 = pneg %p146
        %p322 = scmp.lt.s32.totalorder %s23, 1
        %s323 = scalar_select %p322, %s23, 1
        %s324 = scalar_lea.vmem %s6, %s323
        %p325 = pneg %p175
        %p326 = pneg %p172
        %p327 = pneg %p201
        %p328 = pneg %p198
        %s329 = sand.u32 %s188, 1
        %s330 = scalar_lea.sflag [#allocation5], %s329
        %s331 = sand.u32 %s188, 1
        %s332 = smul.addr %s331, 16
        %s333 = scalar_lea.vmem [#allocation9], %s332
        %p334 = scmp.lt.s32.totalorder %s23, 1
        %s335 = scalar_select %p334, %s23, 1
        %s336 = scalar_lea.vmem %s6, %s335
        %p338 = scmp.eq.s32.totalorder %s23, 0
        // Predicated region
        $region61: #{tpu_custom_call.1} parent=47 // pred_check
          %p339 = pneg %p338
        $region62: #{tpu_custom_call.1} parent=47 // pred_check_branch
          %341 = sbr.rel (%p339) target = $region64
        $region63: #{tpu_custom_call.1} parent=47 // pred_region
          %v342 = vld [vmem:[#allocation3] sm:$0xff]
          %v343 = vld [vmem:[#allocation3 + $0x8] sm:$0xff]
          %v344 = vld [vmem:[#allocation6] sm:$0xf]
          %v345 = vld [vmem:[#allocation6 + $0x4] sm:$0xf]
          %v346 = vld [vmem:[#allocation6 + $0x8] sm:$0xf]
          %v347 = vld [vmem:[#allocation6 + $0xc] sm:$0xf]
          %v348 = vld [vmem:[#allocation6 + $0x10] sm:$0xf]
          %v349 = vld [vmem:[#allocation6 + $0x14] sm:$0xf]
          %v350 = vld [vmem:[#allocation6 + $0x18] sm:$0xf]
          %v351 = vld [vmem:[#allocation6 + $0x1c] sm:$0xf]
          %v352 = vld [vmem:[#allocation6 + $0x20] sm:$0xf]
          %v353 = vld [vmem:[#allocation6 + $0x24] sm:$0xf]
          %v354 = vld [vmem:[#allocation6 + $0x28] sm:$0xf]
          %v355 = vld [vmem:[#allocation6 + $0x2c] sm:$0xf]
          %v356 = vld [vmem:[#allocation6 + $0x30] sm:$0xf]
          %v357 = vld [vmem:[#allocation6 + $0x34] sm:$0xf]
          %v358 = vld [vmem:[#allocation6 + $0x38] sm:$0xf]
          %v359 = vld [vmem:[#allocation6 + $0x3c] sm:$0xf]
          %v360 = vld [vmem:[#allocation6 + $0x40] sm:$0xf]
          %v361 = vld [vmem:[#allocation6 + $0x44] sm:$0xf]
          %v362 = vld [vmem:[#allocation6 + $0x48] sm:$0xf]
          %v363 = vld [vmem:[#allocation6 + $0x4c] sm:$0xf]
          %v364 = vld [vmem:[#allocation6 + $0x50] sm:$0xf]
          %v365 = vld [vmem:[#allocation6 + $0x54] sm:$0xf]
          %v366 = vld [vmem:[#allocation6 + $0x58] sm:$0xf]
          %v367 = vld [vmem:[#allocation6 + $0x5c] sm:$0xf]
          %v368 = vld [vmem:[#allocation6 + $0x60] sm:$0xf]
          %v369 = vld [vmem:[#allocation6 + $0x64] sm:$0xf]
          %v370 = vld [vmem:[#allocation6 + $0x68] sm:$0xf]
          %v371 = vld [vmem:[#allocation6 + $0x6c] sm:$0xf]
          %v372 = vld [vmem:[#allocation6 + $0x70] sm:$0xf]
          %v373 = vld [vmem:[#allocation6 + $0x74] sm:$0xf]
          %v374 = vld [vmem:[#allocation6 + $0x78] sm:$0xf]
          %v375 = vld [vmem:[#allocation6 + $0x7c] sm:$0xf]
          %v376 = vld [vmem:[%s2] sm:$0x1]
          %v378 = vlaneseq
          %v379 = vshrl.u32 %v378, 7
          %v380 = vsub.s32 0, %v379
          %v381 = vrot.slane %v376, %v380
          %v385 = vunpack.c.l.b16 %v342
          %v386 = vunpack.c.h.b16 %v342
          %v387 = vunpack.c.l.b16 %v343
          %v388 = vunpack.c.h.b16 %v343
          %v389 = vpack.c.b16 %v387, %v385
          %v390 = vpack.c.b16 %v388, %v386
          %v425 = vunpack.c.l.b16 %v344
          %v426 = vunpack.c.l.b16 %v345
          %v427 = vunpack.c.l.b16 %v346
          %v428 = vunpack.c.l.b16 %v347
          %v429 = vunpack.c.l.b16 %v348
          %v430 = vunpack.c.l.b16 %v349
          %v431 = vunpack.c.l.b16 %v350
          %v432 = vunpack.c.l.b16 %v351
          %v433 = vunpack.c.l.b16 %v352
          %v434 = vunpack.c.l.b16 %v353
          %v435 = vunpack.c.l.b16 %v354
          %v436 = vunpack.c.l.b16 %v355
          %v437 = vunpack.c.l.b16 %v356
          %v438 = vunpack.c.l.b16 %v357
          %v439 = vunpack.c.l.b16 %v358
          %v440 = vunpack.c.l.b16 %v359
          %v441 = vunpack.c.l.b16 %v360
          %v442 = vunpack.c.l.b16 %v361
          %v443 = vunpack.c.l.b16 %v362
          %v444 = vunpack.c.l.b16 %v363
          %v445 = vunpack.c.l.b16 %v364
          %v446 = vunpack.c.l.b16 %v365
          %v447 = vunpack.c.l.b16 %v366
          %v448 = vunpack.c.l.b16 %v367
          %v449 = vunpack.c.l.b16 %v368
          %v450 = vunpack.c.l.b16 %v369
          %v451 = vunpack.c.l.b16 %v370
          %v452 = vunpack.c.l.b16 %v371
          %v453 = vunpack.c.l.b16 %v372
          %v454 = vunpack.c.l.b16 %v373
          %v455 = vunpack.c.l.b16 %v374
          %v456 = vunpack.c.l.b16 %v375
          %v457 = vpack.c.b16 %v426, %v425
          %v458 = vpack.c.b16 %v428, %v427
          %v459 = vpack.c.b16 %v430, %v429
          %v460 = vpack.c.b16 %v432, %v431
          %v461 = vpack.c.b16 %v434, %v433
          %v462 = vpack.c.b16 %v436, %v435
          %v463 = vpack.c.b16 %v438, %v437
          %v464 = vpack.c.b16 %v440, %v439
          %v465 = vpack.c.b16 %v442, %v441
          %v466 = vpack.c.b16 %v444, %v443
          %v467 = vpack.c.b16 %v446, %v445
          %v468 = vpack.c.b16 %v448, %v447
          %v469 = vpack.c.b16 %v450, %v449
          %v470 = vpack.c.b16 %v452, %v451
          %v471 = vpack.c.b16 %v454, %v453
          %v472 = vpack.c.b16 %v456, %v455
          %489 = vmatprep.subr.bf16.mxu0 0
          %490 = vmatpush1.bf16.msra.mxu0 %v457
          %491 = vmatprep.subr.bf16.mxu0 0
          %492 = vmatpush1.bf16.msra.mxu0 %v458
          %493 = vmatprep.subr.bf16.mxu0 0
          %494 = vmatpush1.bf16.msra.mxu0 %v459
          %495 = vmatprep.subr.bf16.mxu0 0
          %496 = vmatpush1.bf16.msra.mxu0 %v460
          %497 = vmatprep.subr.bf16.mxu0 0
          %498 = vmatpush1.bf16.msra.mxu0 %v461
          %499 = vmatprep.subr.bf16.mxu0 0
          %500 = vmatpush1.bf16.msra.mxu0 %v462
          %501 = vmatprep.subr.bf16.mxu0 0
          %502 = vmatpush1.bf16.msra.mxu0 %v463
          %503 = vmatprep.subr.bf16.mxu0 0
          %504 = vmatpush1.bf16.msra.mxu0 %v464
          %505 = vmatprep.subr.bf16.mxu0 0
          %506 = vmatpush1.bf16.msra.mxu0 %v465
          %507 = vmatprep.subr.bf16.mxu0 0
          %508 = vmatpush1.bf16.msra.mxu0 %v466
          %509 = vmatprep.subr.bf16.mxu0 0
          %510 = vmatpush1.bf16.msra.mxu0 %v467
          %511 = vmatprep.subr.bf16.mxu0 0
          %512 = vmatpush1.bf16.msra.mxu0 %v468
          %513 = vmatprep.subr.bf16.mxu0 0
          %514 = vmatpush1.bf16.msra.mxu0 %v469
          %515 = vmatprep.subr.bf16.mxu0 0
          %516 = vmatpush1.bf16.msra.mxu0 %v470
          %517 = vmatprep.subr.bf16.mxu0 0
          %518 = vmatpush1.bf16.msra.mxu0 %v471
          %519 = vmatprep.subr.bf16.mxu0 0
          %520 = vmatpush1.bf16.msra.mxu0 %v472
          %521 = vmatprep.mubr.bf16.mxu0 %v390
          %522 = vmatmul.mubr.bf16.gmra.mrb[0].mxu0 %v389
          %v523 = vpop.f32.mrb[0].mxu0
          %v524 = vadd.f32 %v381, %v523
          %v525 = vpop.f32.mrb[0].mxu0
          %v526 = vpop.f32.mrb[0].mxu0
          %v527 = vadd.f32 %v381, %v526
          %v528 = vpop.f32.mrb[0].mxu0
          %529 = vdwg.mxu0
          %v530 = vadd.f32 %v524, %v527
          %v531 = vrot.slane %v530, 4
          %v532 = vadd.f32 %v530, %v531
          %v533 = vrot.slane %v532, 2
          %v534 = vadd.f32 %v532, %v533
          %v535 = vrot.slane %v534, 1
          %v536 = vadd.f32 %v534, %v535
          %v537 = vmul.f32 %v524, %v524
          %v538 = vmul.f32 %v527, %v527
          %v539 = vadd.f32 %v537, %v538
          %v540 = vrot.slane %v539, 4
          %v541 = vadd.f32 %v539, %v540
          %v542 = vrot.slane %v541, 2
          %v543 = vadd.f32 %v541, %v542
          %v544 = vrot.slane %v543, 1
          %v545 = vadd.f32 %v543, %v544
          %v546 = vmul.f32 %v536, 0.0625
          %v547 = vmul.f32 %v545, 0.0625
          %v548 = vmul.f32 %v546, %v546
          %v549 = vsub.f32 %v547, %v548
          %v550 = vmax.f32 %v549, 0.0
          %v551 = vld [vmem:[%s3] sm:$0x1]
          %v552 = vadd.f32 %v550, 1e-05
          %v553 = vrsqrt.pop %v552
          %v554 = vmul.f32 %v551, %v553
          %v555 = vld [vmem:[%s4] sm:$0x1]
          %v556 = vmul.f32 %v546, %v554
          %v557 = vsub.f32 %v555, %v556
          %v559 = vlaneseq
          %v560 = vshrl.u32 %v559, 7
          %v561 = vsub.s32 0, %v560
          %v562 = vrot.slane %v554, %v561
          %v564 = vmul.f32 %v524, %v562
          %v565 = vmul.f32 %v527, %v562
          %v567 = vlaneseq
          %v568 = vshrl.u32 %v567, 7
          %v569 = vsub.s32 0, %v568
          %v570 = vrot.slane %v557, %v569
          %v572 = vadd.f32 %v564, %v570
          %v573 = vadd.f32 %v565, %v570
          %v574 = vmax.f32 %v572, 0.0
          %v575 = vmax.f32 %v573, 0.0
          %v576 = vpack.c.bf16 %v575, %v574
          %577 = vst [vmem:[#allocation2] sm:$0xff] %v576
        $region64: #{tpu_custom_call.1} parent=47 // pred_fallthru
          _
        %v578 = vld [vmem:[#allocation2] sm:$0xff]
        %v579 = vld [vmem:[%s300] sm:$0xf]
        %v580 = vld [vmem:[%s300 + $0x4] sm:$0xf]
        %v581 = vld [vmem:[%s300 + $0x8] sm:$0xf]
        %v582 = vld [vmem:[%s300 + $0xc] sm:$0xf]
        %v583 = vld [vmem:[%s300 + $0x10] sm:$0xf]
        %v584 = vld [vmem:[%s300 + $0x14] sm:$0xf]
        %v585 = vld [vmem:[%s300 + $0x18] sm:$0xf]
        %v586 = vld [vmem:[%s300 + $0x1c] sm:$0xf]
        %v587 = vld [vmem:[%s300 + $0x20] sm:$0xf]
        %v588 = vld [vmem:[%s300 + $0x24] sm:$0xf]
        %v589 = vld [vmem:[%s300 + $0x28] sm:$0xf]
        %v590 = vld [vmem:[%s300 + $0x2c] sm:$0xf]
        %v591 = vld [vmem:[%s300 + $0x30] sm:$0xf]
        %v592 = vld [vmem:[%s300 + $0x34] sm:$0xf]
        %v593 = vld [vmem:[%s300 + $0x38] sm:$0xf]
        %v594 = vld [vmem:[%s300 + $0x3c] sm:$0xf]
        %v595 = vld [vmem:[%s336] sm:$0x1]
        %v597 = vlaneseq
        %v598 = vshrl.u32 %v597, 7
        %v599 = vsub.s32 0, %v598
        %v600 = vrot.slane %v595, %v599
        %v618 = vunpack.c.l.b16 %v579
        %v619 = vunpack.c.l.b16 %v580
        %v620 = vunpack.c.l.b16 %v581
        %v621 = vunpack.c.l.b16 %v582
        %v622 = vunpack.c.l.b16 %v583
        %v623 = vunpack.c.l.b16 %v584
        %v624 = vunpack.c.l.b16 %v585
        %v625 = vunpack.c.l.b16 %v586
        %v626 = vunpack.c.l.b16 %v587
        %v627 = vunpack.c.l.b16 %v588
        %v628 = vunpack.c.l.b16 %v589
        %v629 = vunpack.c.l.b16 %v590
        %v630 = vunpack.c.l.b16 %v591
        %v631 = vunpack.c.l.b16 %v592
        %v632 = vunpack.c.l.b16 %v593
        %v633 = vunpack.c.l.b16 %v594
        %v634 = vpack.c.b16 %v619, %v618
        %v635 = vpack.c.b16 %v621, %v620
        %v636 = vpack.c.b16 %v623, %v622
        %v637 = vpack.c.b16 %v625, %v624
        %v638 = vpack.c.b16 %v627, %v626
        %v639 = vpack.c.b16 %v629, %v628
        %v640 = vpack.c.b16 %v631, %v630
        %v641 = vpack.c.b16 %v633, %v632
        %650 = vmatprep.subr.bf16.mxu0 0
        %651 = vmatpush1.bf16.msra.mxu0 %v634
        %652 = vmatprep.subr.bf16.mxu0 0
        %653 = vmatpush1.bf16.msra.mxu0 %v635
        %654 = vmatprep.subr.bf16.mxu0 0
        %655 = vmatpush1.bf16.msra.mxu0 %v636
        %656 = vmatprep.subr.bf16.mxu0 0
        %657 = vmatpush1.bf16.msra.mxu0 %v637
        %658 = vmatprep.subr.bf16.mxu0 0
        %659 = vmatpush1.bf16.msra.mxu0 %v638
        %660 = vmatprep.subr.bf16.mxu0 0
        %661 = vmatpush1.bf16.msra.mxu0 %v639
        %662 = vmatprep.subr.bf16.mxu0 0
        %663 = vmatpush1.bf16.msra.mxu0 %v640
        %664 = vmatprep.subr.bf16.mxu0 0
        %665 = vmatpush1.bf16.msra.mxu0 %v641
        %666 = vmatprep.subr.bf16.mxu0 0
        %667 = vmatpush1.bf16.msra.mxu0 0
        %668 = vmatprep.subr.bf16.mxu0 0
        %669 = vmatpush1.bf16.msra.mxu0 0
        %670 = vmatprep.subr.bf16.mxu0 0
        %671 = vmatpush1.bf16.msra.mxu0 0
        %672 = vmatprep.subr.bf16.mxu0 0
        %673 = vmatpush1.bf16.msra.mxu0 0
        %674 = vmatprep.subr.bf16.mxu0 0
        %675 = vmatpush1.bf16.msra.mxu0 0
        %676 = vmatprep.subr.bf16.mxu0 0
        %677 = vmatpush1.bf16.msra.mxu0 0
        %678 = vmatprep.subr.bf16.mxu0 0
        %679 = vmatpush1.bf16.msra.mxu0 0
        %680 = vmatprep.subr.bf16.mxu0 0
        %681 = vmatpush1.bf16.msra.mxu0 0
        %682 = vmatprep.mubr.bf16.mxu0 0
        %683 = vmatmul.mubr.bf16.gmra.mrb[0].mxu0 %v578
        %v684 = vpop.f32.mrb[0].mxu0
        %v685 = vadd.f32 %v600, %v684
        %v686 = vpop.f32.mrb[0].mxu0
        %v687 = vpop.f32.mrb[0].mxu0
        %v688 = vadd.f32 %v600, %v687
        %v689 = vpop.f32.mrb[0].mxu0
        %690 = vdwg.mxu0
        %691 = vst [vmem:[%s333] sm:$0xff] %v685
        %692 = vst [vmem:[%s333 + $0x8] sm:$0xff] %v688
        %s693 = sand.u32 %s188, 1
        %s694 = scalar_lea.sflag [#allocation5], %s693
        %s695 = sand.u32 %s188, 1
        %s696 = smul.addr %s695, 16
        %s697 = scalar_lea.vmem [#allocation9], %s696
        // Predicated region
        $region65: #{tpu_custom_call.1} parent=47 // pred_check
          %p698 = pneg %p198
        $region66: #{tpu_custom_call.1} parent=47 // pred_check_branch
          %700 = sbr.rel (%p698) target = $region68
        $region67: #{tpu_custom_call.1} parent=47 // pred_region
          %s702 = ssub.s32 256, 256
          %703 = vsyncadd %s694, %s702
          %s704 = smul.addr %s23, 128
          %s705 = scalar_lea.hbm %s7, %s704
          %s706 = sshll.u32 %s697, 4
          %s707 = int_to_ptr.vmem [resolvable:$true] %s706
          %712 = dma.vmem_to_hbm [thread:$0]  %s707, 256, %s705, %s694, 128, 256, 8
        $region68: #{tpu_custom_call.1} parent=47 // pred_fallthru
          _
      $region48: #{tpu_custom_call.1} parent=5 // pred_fallthru
        _
      %p713 = scmp.le.s32.totalorder 2, %s18
      // Predicated region
      $region69: #{tpu_custom_call.1} parent=5 // pred_check
        %p714 = pneg %p713
      $region70: #{tpu_custom_call.1} parent=5 // pred_check_branch
        %716 = sbr.rel (%p714) target = $region72
      $region71: #{tpu_custom_call.1} parent=5 // pred_region
        %s717 = ssub.s32 %s18, 2
        // Predicated region
        $region73: #{tpu_custom_call.1} parent=71 // pred_check
          %p718 = pneg %p204
        $region74: #{tpu_custom_call.1} parent=71 // pred_check_branch
          %720 = sbr.rel (%p718) target = $region76
        $region75: #{tpu_custom_call.1} parent=71 // pred_region
          %s721 = sand.u32 %s189, 1
          %s722 = scalar_lea.sflag [#allocation5], %s721
          %s723 = sand.u32 %s189, 1
          %s724 = smul.addr %s723, 16
          %s725 = scalar_lea.vmem [#allocation9], %s724
          %726 = dma.done %s722, 256
        $region76: #{tpu_custom_call.1} parent=71 // pred_fallthru
          _
      $region72: #{tpu_custom_call.1} parent=5 // pred_fallthru
        _
    $region6: #{tpu_custom_call.1} parent=1 // loop_footer
      %s22 = sadd.s32 1, %s18
    $region7: #{tpu_custom_call.1} parent=1 // loop_footer_branch
      %17 = sbr.rel target = $region3
    $region8: #{tpu_custom_call.1} parent=1 // loop_exit
      _
    %727 = vsyncpa [#allocation4], 1
    %s728 = scalar_lea.sflag [#allocation4], 1
    %729 = vsyncpa %s728, 1
    %730 = vsyncpa [#allocation7], 1
    %731 = vsyncpa [#allocation5], 1
    %s732 = scalar_lea.sflag [#allocation5], 1
    %733 = vsyncpa %s732, 1

</llo_original>
